<compile_context>
chip_gen: v7x
topology: tpu7x:2x2x1
jax: 0.10.0
libtpu: 0.0.40
codegen_flags: <defaults>
</compile_context>

<pallas_src>
import jax
import jax.numpy as jnp
from jax.experimental import pallas as pl
from jax.experimental.pallas import tpu as pltpu

_LANES = 512        # lane-dense width (multiple of 128) -> unmasked stores
_BLOCK_ROWS = 512   # 512*512*4B = 1 MiB per f32 buffer; (1 in + 3 out) * 2
                    # double-buffers = 8 MiB live VMEM -> safe on v5e/v6e/v7x


def _log_t_kernel(scale_ref, shift_ref, inner_ref, x_ref,
                  code_ref, quant_ref, deq_ref):
    # Scalar parameters (SMEM, scalar-prefetched). Hoist reciprocals onto the
    # scalar unit so the vector path uses multiplies only.
    scale = scale_ref[0]
    shift = shift_ref[0]
    inner = inner_ref[0]
    inv_scale = 1.0 / scale
    inv_inner = 1.0 / inner

    x = x_ref[...]

    # mysign(x) == where(x>=0, 1, -1); myabs(x) == abs(x) (the -0.0 vs +0.0
    # difference only appears inside log/exp and yields identical results).
    sgn = jnp.where(x >= 0, 1.0, -1.0).astype(x.dtype)
    code = sgn * (jnp.log(shift + jnp.abs(x) * inv_inner) * inv_scale)

    # Forward value of the straight-through estimator (round-half-to-even,
    # matching torch.round / jnp.round).
    quant = jnp.round(code)

    # quant can round to (+/-)0 from a negative code, so recompute its sign
    # (mysign(0) == +1, and +/-0.0 >= 0 is True -> matches).
    sgn_q = jnp.where(quant >= 0, 1.0, -1.0).astype(quant.dtype)
    deq = sgn_q * ((jnp.exp(jnp.abs(quant) * scale) - shift) * inner)

    code_ref[...] = code
    quant_ref[...] = quant
    deq_ref[...] = deq


def log_t_forward(x, scale, shift, inner_scale):
    """Elementwise Log_T forward.

    x: float32 array of any shape. scale/shift/inner_scale: (1,) float32.
    Returns (code, quant, dequant), each with x's shape and dtype.
    """
    orig_shape = x.shape
    n = x.size
    flat = x.reshape(-1)

    # Lane-dense slab (rows, _LANES); pad the tail so every block is full.
    rows = pl.cdiv(n, _LANES)
    if rows > _BLOCK_ROWS:
        rows = pl.cdiv(rows, _BLOCK_ROWS) * _BLOCK_ROWS
        block_rows = _BLOCK_ROWS            # (512, 512): divisible by (8, 128)
    else:
        block_rows = rows                   # single block == full array dims
    padded = rows * _LANES
    if padded != n:
        # Pad with a value inside the log domain so padded lanes stay finite.
        flat = jnp.pad(flat, (0, padded - n), constant_values=2.0)
    x2 = flat.reshape(rows, _LANES)
    grid = (rows // block_rows,)

    out_sds = jax.ShapeDtypeStruct(x2.shape, x2.dtype)
    # index_map receives (grid_idx, *scalar_prefetch_refs)
    blk = pl.BlockSpec((block_rows, _LANES), lambda i, *_: (i, 0))

    code, quant, deq = pl.pallas_call(
        _log_t_kernel,
        out_shape=(out_sds, out_sds, out_sds),
        grid_spec=pltpu.PrefetchScalarGridSpec(
            num_scalar_prefetch=3,          # scale, shift, inner_scale -> SMEM
            grid=grid,
            in_specs=[blk],
            out_specs=(blk, blk, blk),
        ),
        compiler_params=pltpu.CompilerParams(
            dimension_semantics=("parallel",)),  # shards across v7x's 2 TCs
        cost_estimate=pl.CostEstimate(
            flops=20 * padded,
            transcendentals=2 * padded,          # log + exp per element
            bytes_accessed=16 * padded),         # 4B in + 12B out per element
    )(scale, shift, inner_scale, x2)

    if padded == n:
        def _unflatten(a):
            return a.reshape(orig_shape)
    else:
        def _unflatten(a):
            return a.reshape(-1)[:n].reshape(orig_shape)

    return _unflatten(code), _unflatten(quant), _unflatten(deq)


if __name__ == "__main__":
    # Deterministic parameter init (matches Log_T.__init__; init_form is never
    # called in forward, so inner_scale stays at 1.0).
    scale = jnp.array([1.0 / 64], dtype=jnp.float32)
    shift = jnp.array([-1.0], dtype=jnp.float32)
    inner_scale = jnp.array([1.0], dtype=jnp.float32)

    # Deterministic input. Keep |x| > 1 so log(shift + |x|/inner) is finite
    # (same domain restriction applies to the PyTorch module with shift=-1).
    key = jax.random.PRNGKey(0)
    k_mag, k_sign = jax.random.split(key)
    mag = jnp.abs(jax.random.normal(k_mag, (2, 4, 16, 16), dtype=jnp.float32)) + 1.5
    sgn = jnp.where(jax.random.bernoulli(k_sign, 0.5, (2, 4, 16, 16)), 1.0, -1.0)
    x = (sgn * mag).astype(jnp.float32)

    code, quant, dequant = log_t_forward(x, scale, shift, inner_scale)
    jax.block_until_ready((code, quant, dequant))

    # Sanity check against a pure-JAX reference of the PyTorch math.
    def myabs(v):
        return jnp.where(v == 0, v, jnp.abs(v))

    def mysign(v):
        return jnp.where(v == 0, jnp.ones_like(v), jnp.sign(v))

    ref_code = mysign(x) * jnp.log(shift[0] + myabs(x) / inner_scale[0]) / scale[0]
    ref_quant = jnp.round(ref_code)
    ref_deq = (mysign(ref_quant)
               * (jnp.exp(myabs(ref_quant) * scale[0]) - shift[0]) * inner_scale[0])

    assert jnp.allclose(code, ref_code, rtol=1e-5, atol=1e-5)
    assert jnp.allclose(quant, ref_quant, rtol=1e-5, atol=1e-5)
    assert jnp.allclose(dequant, ref_deq, rtol=1e-5, atol=1e-5)

    print("KERNEL_OK")
</pallas_src>

<mosaic_0001>
module attributes {stable_mosaic.version = 11 : i64} {
  func.func @_log_t_kernel(%arg0: i32, %arg1: memref<1xf32, #tpu.memory_space<smem>>, %arg2: memref<1xf32, #tpu.memory_space<smem>>, %arg3: memref<1xf32, #tpu.memory_space<smem>>, %arg4: memref<4x512xf32, #tpu.memory_space<vmem>>, %arg5: memref<4x512xf32, #tpu.memory_space<vmem>>, %arg6: memref<4x512xf32, #tpu.memory_space<vmem>>, %arg7: memref<4x512xf32, #tpu.memory_space<vmem>>) attributes {dimension_semantics = [#tpu.dimension_semantics<parallel>], iteration_bounds = array<i64: 1>, scalar_prefetch = 3 : i64, scratch_operands = 0 : i64, tpu.core_type = #tpu.core_type<tc>, window_params = [{transform_indices = @transform_0, window_bounds = array<i64: 4, 512>}, {transform_indices = @transform_1, window_bounds = array<i64: 4, 512>}, {transform_indices = @transform_2, window_bounds = array<i64: 4, 512>}, {transform_indices = @transform_3, window_bounds = array<i64: 4, 512>}]} {
    %c0 = arith.constant 0 : index
    %0 = memref.load %arg1[%c0] : memref<1xf32, #tpu.memory_space<smem>>
    %c0_0 = arith.constant 0 : index
    %1 = memref.load %arg2[%c0_0] : memref<1xf32, #tpu.memory_space<smem>>
    %c0_1 = arith.constant 0 : index
    %2 = memref.load %arg3[%c0_1] : memref<1xf32, #tpu.memory_space<smem>>
    %cst = arith.constant 1.000000e+00 : f32
    %3 = arith.divf %cst, %0 : f32
    %cst_2 = arith.constant 1.000000e+00 : f32
    %4 = arith.divf %cst_2, %2 : f32
    %c0_3 = arith.constant 0 : index
    %c0_4 = arith.constant 0 : index
    %5 = vector.load %arg4[%c0_3, %c0_4] : memref<4x512xf32, #tpu.memory_space<vmem>>, vector<4x512xf32>
    %cst_5 = arith.constant 0.000000e+00 : f32
    %6 = vector.broadcast %cst_5 : f32 to vector<4x512xf32>
    %7 = arith.cmpf oge, %5, %6 : vector<4x512xf32>
    %cst_6 = arith.constant 1.000000e+00 : f32
    %cst_7 = arith.constant -1.000000e+00 : f32
    %8 = vector.broadcast %cst_6 : f32 to vector<4x512xf32>
    %9 = vector.broadcast %cst_7 : f32 to vector<4x512xf32>
    %10 = arith.select %7, %8, %9 : vector<4x512xi1>, vector<4x512xf32>
    %11 = math.absf %5 : vector<4x512xf32>
    %12 = vector.broadcast %4 : f32 to vector<4x512xf32>
    %13 = arith.mulf %11, %12 : vector<4x512xf32>
    %14 = vector.broadcast %1 : f32 to vector<4x512xf32>
    %15 = arith.addf %14, %13 : vector<4x512xf32>
    %16 = math.log %15 : vector<4x512xf32>
    %17 = vector.broadcast %3 : f32 to vector<4x512xf32>
    %18 = arith.mulf %16, %17 : vector<4x512xf32>
    %19 = arith.mulf %10, %18 : vector<4x512xf32>
    %20 = math.roundeven %19 : vector<4x512xf32>
    %cst_8 = arith.constant 0.000000e+00 : f32
    %21 = vector.broadcast %cst_8 : f32 to vector<4x512xf32>
    %22 = arith.cmpf oge, %20, %21 : vector<4x512xf32>
    %cst_9 = arith.constant 1.000000e+00 : f32
    %cst_10 = arith.constant -1.000000e+00 : f32
    %23 = vector.broadcast %cst_9 : f32 to vector<4x512xf32>
    %24 = vector.broadcast %cst_10 : f32 to vector<4x512xf32>
    %25 = arith.select %22, %23, %24 : vector<4x512xi1>, vector<4x512xf32>
    %26 = math.absf %20 : vector<4x512xf32>
    %27 = vector.broadcast %0 : f32 to vector<4x512xf32>
    %28 = arith.mulf %26, %27 : vector<4x512xf32>
    %29 = math.exp %28 : vector<4x512xf32>
    %30 = vector.broadcast %1 : f32 to vector<4x512xf32>
    %31 = arith.subf %29, %30 : vector<4x512xf32>
    %32 = vector.broadcast %2 : f32 to vector<4x512xf32>
    %33 = arith.mulf %31, %32 : vector<4x512xf32>
    %34 = arith.mulf %25, %33 : vector<4x512xf32>
    %c0_11 = arith.constant 0 : index
    %c0_12 = arith.constant 0 : index
    %35 = vector.load %arg5[%c0_11, %c0_12] : memref<4x512xf32, #tpu.memory_space<vmem>>, vector<4x512xf32>
    tpu.vector_store %arg5[%c0_11, %c0_12], %19 {strides = array<i32>} : memref<4x512xf32, #tpu.memory_space<vmem>>, vector<4x512xf32>,
    %c0_13 = arith.constant 0 : index
    %c0_14 = arith.constant 0 : index
    %36 = vector.load %arg6[%c0_13, %c0_14] : memref<4x512xf32, #tpu.memory_space<vmem>>, vector<4x512xf32>
    tpu.vector_store %arg6[%c0_13, %c0_14], %20 {strides = array<i32>} : memref<4x512xf32, #tpu.memory_space<vmem>>, vector<4x512xf32>,
    %c0_15 = arith.constant 0 : index
    %c0_16 = arith.constant 0 : index
    %37 = vector.load %arg7[%c0_15, %c0_16] : memref<4x512xf32, #tpu.memory_space<vmem>>, vector<4x512xf32>
    tpu.vector_store %arg7[%c0_15, %c0_16], %34 {strides = array<i32>} : memref<4x512xf32, #tpu.memory_space<vmem>>, vector<4x512xf32>,
    return
  }
  func.func @transform_0(%arg0: i32, %arg1: memref<1xf32, #tpu.memory_space<smem>>, %arg2: memref<1xf32, #tpu.memory_space<smem>>, %arg3: memref<1xf32, #tpu.memory_space<smem>>) -> (i32, i32) {
    %c0_i32 = arith.constant 0 : i32
    %c0_i32_0 = arith.constant 0 : i32
    return %arg0, %c0_i32 : i32, i32
  }
  func.func @transform_1(%arg0: i32, %arg1: memref<1xf32, #tpu.memory_space<smem>>, %arg2: memref<1xf32, #tpu.memory_space<smem>>, %arg3: memref<1xf32, #tpu.memory_space<smem>>) -> (i32, i32) {
    %c0_i32 = arith.constant 0 : i32
    %c0_i32_0 = arith.constant 0 : i32
    return %arg0, %c0_i32 : i32, i32
  }
  func.func @transform_2(%arg0: i32, %arg1: memref<1xf32, #tpu.memory_space<smem>>, %arg2: memref<1xf32, #tpu.memory_space<smem>>, %arg3: memref<1xf32, #tpu.memory_space<smem>>) -> (i32, i32) {
    %c0_i32 = arith.constant 0 : i32
    %c0_i32_0 = arith.constant 0 : i32
    return %arg0, %c0_i32 : i32, i32
  }
  func.func @transform_3(%arg0: i32, %arg1: memref<1xf32, #tpu.memory_space<smem>>, %arg2: memref<1xf32, #tpu.memory_space<smem>>, %arg3: memref<1xf32, #tpu.memory_space<smem>>) -> (i32, i32) {
    %c0_i32 = arith.constant 0 : i32
    %c0_i32_0 = arith.constant 0 : i32
    return %arg0, %c0_i32 : i32, i32
  }
}

</mosaic_0001>

<llo_original>
// kernel: tpu_custom_call.1
$region0: #{tpu_custom_call.1}
  #allocation0 [shape = 'u32[]', space=smem, size = 0x4, offset = 0x4, fixed_abs, tag = 'smem constant byte address 0x4 - core index']
  #allocation1 [shape = 'u32[144,128]{1,0:T(1,128)}', space=vmem, size = 0x12000, scoped, tag = 'internal scratch']
  #allocation2 [shape = 's32[1]{0}', space=sflag, size = 0x4, scoped, tag = 'scoped memory for tpu_custom_call.1']
  #allocation3 [shape = 'f32[1]{0:T(128)S(6)}', space=smem, size = 0x200, scoped, tag = 'prefetched SMEM operand 0']
  #allocation4 [shape = 'f32[1]{0:T(128)S(6)}', space=smem, size = 0x200, scoped, tag = 'prefetched SMEM operand 1']
  #allocation5 [shape = 'f32[1]{0:T(128)S(6)}', space=smem, size = 0x200, scoped, tag = 'prefetched SMEM operand 2']
  %s0 = inlined_call_operand.<no memory space> [shape: f32[1], index: 0, kind: input, shape index: {}]
  %s1 = inlined_call_operand.<no memory space> [shape: f32[1], index: 1, kind: input, shape index: {}]
  %s2 = inlined_call_operand.<no memory space> [shape: f32[1], index: 2, kind: input, shape index: {}]
  %s3 = inlined_call_operand.hbm [shape: f32[4,512], index: 3, kind: input, shape index: {}]
  %s4 = inlined_call_operand.hbm [shape: f32[4,512], index: 4, kind: output, shape index: {0}]
  %s5 = inlined_call_operand.hbm [shape: f32[4,512], index: 5, kind: output, shape index: {1}]
  %s6 = inlined_call_operand.hbm [shape: f32[4,512], index: 6, kind: output, shape index: {2}]
  %7 = xla_tuple %s4, %s5, %s6
  %s8 = sld [smem:[#allocation0]]
  $region34: #{tpu_custom_call.1} parent=0
    _
  %s10 = ssub.s32 1, %s8
  %s11 = scalar_select 0, %s10, %s8
  %12 = sst [smem:[#allocation3]] %s0
  %13 = sst [smem:[#allocation4]] %s1
  %14 = sst [smem:[#allocation5]] %s2
  $region1: #{tpu_custom_call.1} parent=0
    #allocation6 [shape = 'u8[8192]{0}', space=vmem, size = 0x2000, scoped, tag = 'input window, operand 3, single buffered']
    #allocation7 [shape = 's32[1]{0}', space=sflag, size = 0x4, scoped, tag = 'scoped memory for tpu_custom_call.1']
    #allocation8 [shape = 's32[1]{0}', space=sflag, size = 0x4, scoped, tag = 'scoped memory for tpu_custom_call.1']
    #allocation9 [shape = 'u8[8192]{0}', space=vmem, size = 0x2000, scoped, tag = 'output window, operand 0, single buffered']
    #allocation10 [shape = 'u8[8192]{0}', space=vmem, size = 0x2000, scoped, tag = 'output window, operand 1, single buffered']
    #allocation11 [shape = 's32[1]{0}', space=sflag, size = 0x4, scoped, tag = 'scoped memory for tpu_custom_call.1']
    #allocation12 [shape = 'u8[8192]{0}', space=vmem, size = 0x2000, scoped, tag = 'output window, operand 2, single buffered']
    %15 = vsyncpa [#allocation7], 0
    %16 = vsyncpa [#allocation8], 0
    %17 = vsyncpa [#allocation11], 0
    // Predicated region
    $region2: #{tpu_custom_call.1} parent=1 // pred_check
      _
    $region3: #{tpu_custom_call.1} parent=1 // pred_check_branch
      %19 = sbr.rel (0) target = $region5
    $region4: #{tpu_custom_call.1} parent=1 // pred_region
      %s21 = ssub.s32 256, 256
      %22 = vsyncadd [#allocation7], %s21
      %s24 = sshll.u32 [#allocation6], 4
      %s25 = int_to_ptr.vmem [resolvable:$true] %s24
      %27 = dma.hbm_to_vmem [thread:$0]  %s3, 256, %s25, [#allocation7]
    $region5: #{tpu_custom_call.1} parent=1 // pred_fallthru
      _
    // Predicated region
    $region6: #{tpu_custom_call.1} parent=1 // pred_check
      _
    $region7: #{tpu_custom_call.1} parent=1 // pred_check_branch
      %29 = sbr.rel (0) target = $region9
    $region8: #{tpu_custom_call.1} parent=1 // pred_region
      %30 = dma.done [#allocation7], 256
    $region9: #{tpu_custom_call.1} parent=1 // pred_fallthru
      _
    %s31 = sld [smem:[#allocation3]]
    %s32 = sld [smem:[#allocation4]]
    %s33 = sld [smem:[#allocation5]]
    %v34 = vstv %s31
    %v35 = vrcp.pop %v34
    %s36 = vtos %v35
    %v37 = vstv %s33
    %v38 = vrcp.pop %v37
    %s39 = vtos %v38
    %v40 = vld [vmem:[#allocation6] sm:$0xff]
    %v41 = vld [vmem:[#allocation6 + $0x8] sm:$0xff]
    %vm42 = vcmp.ge.f32.partialorder %v40, 0.0
    %vm43 = vcmp.ge.f32.partialorder %v41, 0.0
    %v44 = vsel %vm42, 1.0, -1.0
    %v45 = vsel %vm43, 1.0, -1.0
    %v46 = vand.u32 2147483647, %v40
    %v47 = vand.u32 2147483647, %v41
    %v48 = vstv %s39
    %v49 = vmul.f32 %v46, %v48
    %v50 = vmul.f32 %v47, %v48
    %v51 = vstv %s32
    %v52 = vadd.f32 %v51, %v49
    %v53 = vadd.f32 %v51, %v50
    %v54 = vlog2.pop %v52
    %v55 = vmul.f32 %v54, 0.6931472
    %v56 = vlog2.pop %v53
    %v57 = vmul.f32 %v56, 0.6931472
    %v58 = vstv %s36
    %v59 = vmul.f32 %v55, %v58
    %v60 = vmul.f32 %v57, %v58
    %v61 = vmul.f32 %v44, %v59
    %v62 = vmul.f32 %v45, %v60
    %v63 = vround.ne.pseudo %v61
    %v64 = vround.ne.pseudo %v62
    %vm65 = vcmp.ge.f32.partialorder %v63, 0.0
    %vm66 = vcmp.ge.f32.partialorder %v64, 0.0
    %v67 = vsel %vm65, 1.0, -1.0
    %v68 = vsel %vm66, 1.0, -1.0
    %v69 = vand.u32 2147483647, %v63
    %v70 = vand.u32 2147483647, %v64
    %v71 = vstv %s31
    %v72 = vmul.f32 %v69, %v71
    %v73 = vmul.f32 %v70, %v71
    %v74 = vmul.f32 %v72, 1.442695
    %v75 = vpow.pop %v74
    %v76 = vmul.f32 %v73, 1.442695
    %v77 = vpow.pop %v76
    %v78 = vsub.f32 %v75, %v51
    %v79 = vsub.f32 %v77, %v51
    %v80 = vstv %s33
    %v81 = vmul.f32 %v78, %v80
    %v82 = vmul.f32 %v79, %v80
    %v83 = vmul.f32 %v67, %v81
    %v84 = vmul.f32 %v68, %v82
    %85 = vst [vmem:[#allocation9] sm:$0xff] %v61
    %86 = vst [vmem:[#allocation9 + $0x8] sm:$0xff] %v62
    %87 = vst [vmem:[#allocation10] sm:$0xff] %v63
    %88 = vst [vmem:[#allocation10 + $0x8] sm:$0xff] %v64
    %89 = vst [vmem:[#allocation12] sm:$0xff] %v83
    %90 = vst [vmem:[#allocation12 + $0x8] sm:$0xff] %v84
    // Predicated region
    $region10: #{tpu_custom_call.1} parent=1 // pred_check
      _
    $region11: #{tpu_custom_call.1} parent=1 // pred_check_branch
      %92 = sbr.rel (0) target = $region13
    $region12: #{tpu_custom_call.1} parent=1 // pred_region
      %s94 = ssub.s32 256, 256
      %95 = vsyncadd [#allocation8], %s94
      %s97 = sshll.u32 [#allocation9], 4
      %s98 = int_to_ptr.vmem [resolvable:$true] %s97
      %100 = dma.vmem_to_hbm [thread:$0]  %s98, 256, %s4, [#allocation8]
    $region13: #{tpu_custom_call.1} parent=1 // pred_fallthru
      _
    // Predicated region
    $region14: #{tpu_custom_call.1} parent=1 // pred_check
      _
    $region15: #{tpu_custom_call.1} parent=1 // pred_check_branch
      %102 = sbr.rel (0) target = $region17
    $region16: #{tpu_custom_call.1} parent=1 // pred_region
      %s104 = ssub.s32 256, 256
      %105 = vsyncadd [#allocation11], %s104
      %s107 = sshll.u32 [#allocation10], 4
      %s108 = int_to_ptr.vmem [resolvable:$true] %s107
      %110 = dma.vmem_to_hbm [thread:$0]  %s108, 256, %s5, [#allocation11]
    $region17: #{tpu_custom_call.1} parent=1 // pred_fallthru
      _
    // Predicated region
    $region18: #{tpu_custom_call.1} parent=1 // pred_check
      _
    $region19: #{tpu_custom_call.1} parent=1 // pred_check_branch
      %112 = sbr.rel (0) target = $region21
    $region20: #{tpu_custom_call.1} parent=1 // pred_region
      %s114 = ssub.s32 256, 256
      %115 = vsyncadd [#allocation11], %s114
      %s117 = sshll.u32 [#allocation12], 4
      %s118 = int_to_ptr.vmem [resolvable:$true] %s117
      %120 = dma.vmem_to_hbm [thread:$0]  %s118, 256, %s6, [#allocation11]
    $region21: #{tpu_custom_call.1} parent=1 // pred_fallthru
      _
    // Predicated region
    $region22: #{tpu_custom_call.1} parent=1 // pred_check
      _
    $region23: #{tpu_custom_call.1} parent=1 // pred_check_branch
      %122 = sbr.rel (0) target = $region25
    $region24: #{tpu_custom_call.1} parent=1 // pred_region
      %123 = dma.done [#allocation8], 256
    $region25: #{tpu_custom_call.1} parent=1 // pred_fallthru
      _
    // Predicated region
    $region26: #{tpu_custom_call.1} parent=1 // pred_check
      _
    $region27: #{tpu_custom_call.1} parent=1 // pred_check_branch
      %125 = sbr.rel (0) target = $region29
    $region28: #{tpu_custom_call.1} parent=1 // pred_region
      %126 = dma.done [#allocation11], 256
    $region29: #{tpu_custom_call.1} parent=1 // pred_fallthru
      _
    // Predicated region
    $region30: #{tpu_custom_call.1} parent=1 // pred_check
      _
    $region31: #{tpu_custom_call.1} parent=1 // pred_check_branch
      %128 = sbr.rel (0) target = $region33
    $region32: #{tpu_custom_call.1} parent=1 // pred_region
      %129 = dma.done [#allocation11], 256
    $region33: #{tpu_custom_call.1} parent=1 // pred_fallthru
      _
    %130 = vsyncpa [#allocation7], 1
    %131 = vsyncpa [#allocation8], 1
    %132 = vsyncpa [#allocation11], 1

</llo_original>
